<compile_context>
chip_gen: v7x
topology: tpu7x:2x2x1
jax: 0.10.0
libtpu: 0.0.40
codegen_flags: <defaults>
</compile_context>

<pallas_src>
import jax
import jax.numpy as jnp
from jax.experimental import pallas as pl
from jax.experimental.pallas import tpu as pltpu

F_IN = 30
F_OUT = 10
LANE = 128          # VMEM lane width (used only for the VMEM budget estimate)
BATCH_TILE = 8192   # max rows per grid step when the batch axis is tiled


def _linear_kernel(x_ref, w_ref, b_ref, o_ref):
    # One MXU matmul per tile (f32 accumulation); bias add rides in idle VPU slots.
    acc = jnp.dot(x_ref[...], w_ref[...], preferred_element_type=jnp.float32)
    o_ref[...] = (acc + b_ref[...].astype(jnp.float32)).astype(o_ref.dtype)
    # TODO(synk): downstream SVM objective (hinge-loss margins / argmax) could be
    # fused here for free (kernel is DMA-bound), but the module's forward only
    # returns the linear scores, so semantics are kept as-is.


def _round_up(n, m):
    return ((n + m - 1) // m) * m


def _linear_pallas(x, w_t, b_row):
    """y = x @ w_t + b_row.  x: (B, 30), w_t: (30, 10), b_row: (1, 10) -> (B, 10)."""
    B, f_in = x.shape
    f_out = w_t.shape[1]
    out_dtype = x.dtype

    if B <= BATCH_TILE:
        # Gridless path: single kernel invocation, everything resident in VMEM,
        # no per-step pipeline overhead.
        return pl.pallas_call(
            _linear_kernel,
            out_shape=jax.ShapeDtypeStruct((B, f_out), out_dtype),
            in_specs=[
                pl.BlockSpec(memory_space=pltpu.MemorySpace.VMEM),
                pl.BlockSpec(memory_space=pltpu.MemorySpace.VMEM),
                pl.BlockSpec(memory_space=pltpu.MemorySpace.VMEM),
            ],
            out_specs=pl.BlockSpec(memory_space=pltpu.MemorySpace.VMEM),
        )(x, w_t, b_row)

    # Gridded path: tile the batch axis with a cdiv grid (no explicit padding;
    # the ragged last block is masked on writeback). Balance tiles across grid
    # steps so both v7x TensorCores get comparable work; keep tiles multiple of 8.
    n_steps = pl.cdiv(B, BATCH_TILE)
    tb = _round_up(-(-B // n_steps), 8)
    grid = pl.cdiv(B, tb)

    # VMEM budget using the true lane-padded footprint: x and out tiles each
    # occupy tb * 128 lanes in VMEM regardless of their logical last dim.
    itemsize = jnp.dtype(out_dtype).itemsize
    tile_bytes = tb * LANE * itemsize                 # one x OR out tile in VMEM
    resident_bytes = (_round_up(f_in, 8) + 8) * LANE * itemsize  # w_t + b_row
    vmem_bytes = 2 * (2 * tile_bytes) + 2 * resident_bytes       # double-buffered
    vmem_limit = int(min(max(int(vmem_bytes * 1.5), 8 << 20), 30 << 20))

    return pl.pallas_call(
        _linear_kernel,
        out_shape=jax.ShapeDtypeStruct((B, f_out), out_dtype),
        grid_spec=pltpu.PrefetchScalarGridSpec(
            num_scalar_prefetch=0,
            grid=(grid,),
            in_specs=[
                pl.BlockSpec((tb, f_in), lambda i: (i, 0)),     # batch-tiled x
                pl.BlockSpec((f_in, f_out), lambda i: (0, 0)),  # resident weights
                pl.BlockSpec((1, f_out), lambda i: (0, 0)),     # resident bias
            ],
            out_specs=pl.BlockSpec((tb, f_out), lambda i: (i, 0)),
        ),
        compiler_params=pltpu.CompilerParams(
            dimension_semantics=("parallel",),   # shard batch tiles across TCs (v7x)
            vmem_limit_bytes=vmem_limit,
        ),
    )(x, w_t, b_row)


def svm_forward(x, w, b):
    """PyTorch nn.Linear(30, 10) forward: y = x @ w.T + b (per-call param prep)."""
    return _linear_pallas(x, jnp.asarray(w).T, jnp.asarray(b).reshape(1, -1))


def make_svm_forward(w, b):
    """Hoist the weight transpose / bias reshape out of the per-call path and jit."""
    w_t = jnp.asarray(w).T            # (30, 10), kept in the weights' own dtype
    b_row = jnp.asarray(b).reshape(1, -1)   # (1, 10)
    return jax.jit(lambda x: _linear_pallas(x, w_t, b_row))


def init_params(key, in_features=F_IN, out_features=F_OUT):
    # Deterministic init mimicking nn.Linear's uniform(-1/sqrt(fan_in), 1/sqrt(fan_in)).
    kw, kb = jax.random.split(key)
    bound = 1.0 / jnp.sqrt(jnp.float32(in_features))
    w = jax.random.uniform(kw, (out_features, in_features), jnp.float32, -bound, bound)
    b = jax.random.uniform(kb, (out_features,), jnp.float32, -bound, bound)
    return w, b


if __name__ == "__main__":
    key = jax.random.PRNGKey(0)
    k_x, k_x2, k_p = jax.random.split(key, 3)

    w, b = init_params(k_p)
    forward = make_svm_forward(w, b)

    # Small batch: exercises the gridless (whole-array VMEM) path.
    B_small = 8
    x_small = jax.random.normal(k_x, (B_small, F_IN), dtype=jnp.float32)
    out_small = jax.block_until_ready(forward(x_small))
    ref_small = x_small @ w.T + b
    assert out_small.shape == (B_small, F_OUT)
    assert jnp.allclose(out_small, ref_small, atol=1e-5, rtol=1e-5)

    # Larger ragged batch: exercises the cdiv-grid batch-tiled path (masked last block).
    B_big = BATCH_TILE + 40
    x_big = jax.random.normal(k_x2, (B_big, F_IN), dtype=jnp.float32)
    out_big = jax.block_until_ready(forward(x_big))
    ref_big = x_big @ w.T + b
    assert out_big.shape == (B_big, F_OUT)
    assert jnp.allclose(out_big, ref_big, atol=1e-5, rtol=1e-5)

    print("KERNEL_OK")
</pallas_src>

<mosaic_0001>
module attributes {stable_mosaic.version = 11 : i64} {
  func.func @_linear_kernel(%arg0: memref<8x30xf32, #tpu.memory_space<vmem>>, %arg1: memref<30x10xf32, #tpu.memory_space<vmem>>, %arg2: memref<1x10xf32, #tpu.memory_space<vmem>>, %arg3: memref<8x10xf32, #tpu.memory_space<vmem>>) attributes {dimension_semantics = [], scalar_prefetch = 0 : i64, scratch_operands = 0 : i64, tpu.core_type = #tpu.core_type<tc>} {
    %c0 = arith.constant 0 : index
    %c0_0 = arith.constant 0 : index
    %0 = vector.load %arg0[%c0, %c0_0] : memref<8x30xf32, #tpu.memory_space<vmem>>, vector<8x30xf32>
    %c0_1 = arith.constant 0 : index
    %c0_2 = arith.constant 0 : index
    %1 = vector.load %arg1[%c0_1, %c0_2] : memref<30x10xf32, #tpu.memory_space<vmem>>, vector<30x10xf32>
    %cst = arith.constant dense<0.000000e+00> : vector<8x10xf32>
    %2 = tpu.matmul %0, %1, %cst {dimension_numbers = #tpu.dot_dimension_numbers<[1], [0], [0], [1], [0, 0, 1, 1], [], []>} : vector<8x30xf32>, vector<30x10xf32>, vector<8x10xf32> -> vector<8x10xf32>
    %c0_3 = arith.constant 0 : index
    %c0_4 = arith.constant 0 : index
    %3 = vector.load %arg2[%c0_3, %c0_4] : memref<1x10xf32, #tpu.memory_space<vmem>>, vector<1x10xf32>
    %4 = vector.broadcast %3 : vector<1x10xf32> to vector<8x10xf32>
    %5 = arith.addf %2, %4 : vector<8x10xf32>
    %c0_5 = arith.constant 0 : index
    %c0_6 = arith.constant 0 : index
    %6 = vector.load %arg3[%c0_5, %c0_6] : memref<8x10xf32, #tpu.memory_space<vmem>>, vector<8x10xf32>
    tpu.vector_store %arg3[%c0_5, %c0_6], %5 {strides = array<i32>} : memref<8x10xf32, #tpu.memory_space<vmem>>, vector<8x10xf32>,
    return
  }
}

</mosaic_0001>

<llo_original>
// kernel: _lambda_.1
$region0: #{_lambda_.1}
  #allocation0 [shape = 'u32[]', space=smem, size = 0x4, offset = 0x4, fixed_abs, tag = 'smem constant byte address 0x4 - core index']
  #allocation1 [shape = 'u32[144,128]{1,0:T(1,128)}', space=vmem, size = 0x12000, scoped, tag = 'internal scratch']
  %s0 = inlined_call_operand.hbm [shape: f32[8,30], index: 0, kind: input, shape index: {}]
  %s1 = inlined_call_operand.hbm [shape: f32[30,10], index: 1, kind: input, shape index: {}]
  %s2 = inlined_call_operand.vmem [shape: f32[1,10], index: 2, kind: input, shape index: {}]
  %s3 = inlined_call_operand.hbm [shape: f32[8,10], index: 3, kind: output, shape index: {}]
  %s4 = sld [smem:[#allocation0]]
  $region30: #{_lambda_.1} parent=0
    _
  %s6 = ssub.s32 1, %s4
  %s7 = scalar_select 0, %s6, %s4
  $region1: #{_lambda_.1} parent=0
    #allocation2 [shape = 'u8[4096]{0}', space=vmem, size = 0x1000, scoped, tag = 'input window, operand 0, single buffered']
    #allocation3 [shape = 's32[1]{0}', space=sflag, size = 0x4, scoped, tag = 'scoped memory for _lambda_.1']
    #allocation4 [shape = 's32[1]{0}', space=sflag, size = 0x4, scoped, tag = 'scoped memory for _lambda_.1']
    #allocation5 [shape = 'u8[16384]{0}', space=vmem, size = 0x4000, scoped, tag = 'input window, operand 1, single buffered']
    #allocation6 [shape = 's32[1]{0}', space=sflag, size = 0x4, scoped, tag = 'scoped memory for _lambda_.1']
    #allocation7 [shape = 'u8[4096]{0}', space=vmem, size = 0x1000, scoped, tag = 'output window, operand 0, single buffered']
    %8 = vsyncpa [#allocation3], 0
    %9 = vsyncpa [#allocation6], 0
    %10 = vsyncpa [#allocation4], 0
    // Predicated region
    $region2: #{_lambda_.1} parent=1 // pred_check
      _
    $region3: #{_lambda_.1} parent=1 // pred_check_branch
      %12 = sbr.rel (0) target = $region5
    $region4: #{_lambda_.1} parent=1 // pred_region
      %s14 = ssub.s32 128, 128
      %15 = vsyncadd [#allocation3], %s14
      %s17 = sshll.u32 [#allocation2], 4
      %s18 = int_to_ptr.vmem [resolvable:$true] %s17
      %20 = dma.hbm_to_vmem [thread:$0]  %s0, 128, %s18, [#allocation3]
    $region5: #{_lambda_.1} parent=1 // pred_fallthru
      _
    // Predicated region
    $region6: #{_lambda_.1} parent=1 // pred_check
      _
    $region7: #{_lambda_.1} parent=1 // pred_check_branch
      %22 = sbr.rel (0) target = $region9
    $region8: #{_lambda_.1} parent=1 // pred_region
      %s24 = ssub.s32 512, 512
      %25 = vsyncadd [#allocation6], %s24
      %s26 = sshll.u32 [#allocation5], 4
      %s27 = int_to_ptr.vmem [resolvable:$true] %s26
      %32 = dma.hbm_to_vmem [thread:$0]  %s1, 512, %s27, [#allocation6], 128, 128, 8
    $region9: #{_lambda_.1} parent=1 // pred_fallthru
      _
    // Predicated region
    $region10: #{_lambda_.1} parent=1 // pred_check
      _
    $region11: #{_lambda_.1} parent=1 // pred_check_branch
      %34 = sbr.rel (0) target = $region13
    $region12: #{_lambda_.1} parent=1 // pred_region
      _
    $region13: #{_lambda_.1} parent=1 // pred_fallthru
      _
    // Predicated region
    $region14: #{_lambda_.1} parent=1 // pred_check
      _
    $region15: #{_lambda_.1} parent=1 // pred_check_branch
      %36 = sbr.rel (0) target = $region17
    $region16: #{_lambda_.1} parent=1 // pred_region
      %37 = dma.done [#allocation3], 128
    $region17: #{_lambda_.1} parent=1 // pred_fallthru
      _
    // Predicated region
    $region18: #{_lambda_.1} parent=1 // pred_check
      _
    $region19: #{_lambda_.1} parent=1 // pred_check_branch
      %39 = sbr.rel (0) target = $region21
    $region20: #{_lambda_.1} parent=1 // pred_region
      %40 = dma.done [#allocation6], 512
    $region21: #{_lambda_.1} parent=1 // pred_fallthru
      _
    %v41 = vld [vmem:[#allocation2] sm:$0xff]
    %v42 = vld [vmem:[#allocation5] sm:$0xff]
    %v43 = vld [vmem:[#allocation5 + $0x8] sm:$0xff]
    %v44 = vld [vmem:[#allocation5 + $0x10] sm:$0xff]
    %v45 = vld [vmem:[#allocation5 + $0x18] sm:$0x3f]
    %v46 = vld [vmem:[%s2] sm:$0x1]
    %v48 = vlaneseq
    %v49 = vshrl.u32 %v48, 7
    %v50 = vsub.s32 0, %v49
    %v51 = vrot.slane %v46, %v50
    %vm53 = vcmask 244736
    %v55 = vsel %vm53, %v41, 0
    %vm57 = vcmask 1045504
    %v59 = vsel %vm57, %v45, 0
    %61 = vmatprep.subr.mxu0 0.0
    %62 = vmatpush1.msra.mxu0 %v42
    %63 = vmatprep.subr.mxu0 0.0
    %64 = vmatpush1.msra.mxu0 %v43
    %65 = vmatprep.subr.mxu0 0.0
    %66 = vmatpush1.msra.mxu0 %v44
    %67 = vmatprep.subr.mxu0 0.0
    %68 = vmatpush1.msra.mxu0 %v59
    %69 = vmatprep.subr.mxu0 0.0
    %70 = vmatpush1.msra.mxu0 0.0
    %71 = vmatprep.subr.mxu0 0.0
    %72 = vmatpush1.msra.mxu0 0.0
    %73 = vmatprep.subr.mxu0 0.0
    %74 = vmatpush1.msra.mxu0 0.0
    %75 = vmatprep.subr.mxu0 0.0
    %76 = vmatpush1.msra.mxu0 0.0
    %77 = vmatprep.subr.mxu0 0.0
    %78 = vmatpush1.msra.mxu0 0.0
    %79 = vmatprep.subr.mxu0 0.0
    %80 = vmatpush1.msra.mxu0 0.0
    %81 = vmatprep.subr.mxu0 0.0
    %82 = vmatpush1.msra.mxu0 0.0
    %83 = vmatprep.subr.mxu0 0.0
    %84 = vmatpush1.msra.mxu0 0.0
    %85 = vmatprep.subr.mxu0 0.0
    %86 = vmatpush1.msra.mxu0 0.0
    %87 = vmatprep.subr.mxu0 0.0
    %88 = vmatpush1.msra.mxu0 0.0
    %89 = vmatprep.subr.mxu0 0.0
    %90 = vmatpush1.msra.mxu0 0.0
    %91 = vmatprep.subr.mxu0 0.0
    %92 = vmatpush1.msra.mxu0 0.0
    %93 = vmatprep.subr.mxu0 0.0
    %94 = vmatpush1.msra.mxu0 0.0
    %95 = vmatprep.subr.mxu0 0.0
    %96 = vmatpush1.msra.mxu0 0.0
    %97 = vmatprep.subr.mxu0 0.0
    %98 = vmatpush1.msra.mxu0 0.0
    %99 = vmatprep.subr.mxu0 0.0
    %100 = vmatpush1.msra.mxu0 0.0
    %101 = vmatprep.subr.mxu0 0.0
    %102 = vmatpush1.msra.mxu0 0.0
    %103 = vmatprep.subr.mxu0 0.0
    %104 = vmatpush1.msra.mxu0 0.0
    %105 = vmatprep.subr.mxu0 0.0
    %106 = vmatpush1.msra.mxu0 0.0
    %107 = vmatprep.subr.mxu0 0.0
    %108 = vmatpush1.msra.mxu0 0.0
    %109 = vmatprep.subr.mxu0 0.0
    %110 = vmatpush1.msra.mxu0 0.0
    %111 = vmatprep.subr.mxu0 0.0
    %112 = vmatpush1.msra.mxu0 0.0
    %113 = vmatprep.subr.mxu0 0.0
    %114 = vmatpush1.msra.mxu0 0.0
    %115 = vmatprep.subr.mxu0 0.0
    %116 = vmatpush1.msra.mxu0 0.0
    %117 = vmatprep.subr.mxu0 0.0
    %118 = vmatpush1.msra.mxu0 0.0
    %119 = vmatprep.subr.mxu0 0.0
    %120 = vmatpush1.msra.mxu0 0.0
    %121 = vmatprep.subr.mxu0 0.0
    %122 = vmatpush1.msra.mxu0 0.0
    %123 = vmatprep.subr.mxu0 0.0
    %124 = vmatpush1.msra.mxu0 0.0
    %125 = vmatprep.mubr.f32.mxu0 0.0
    %126 = vmatmul.mubr.f32.gmra.mrb[0].mxu0 %v55
    %v127 = vpop.f32.mrb[0].mxu0
    %v128 = vadd.f32 %v51, %v127
    %v129 = vpop.f32.mrb[0].mxu0
    %130 = vdwg.mxu0
    %vm131 = vcmask 80896
    %132 = vst.msk [vmem:[#allocation7] sm:$0xff] %vm131, %v128
    // Predicated region
    $region22: #{_lambda_.1} parent=1 // pred_check
      _
    $region23: #{_lambda_.1} parent=1 // pred_check_branch
      %134 = sbr.rel (0) target = $region25
    $region24: #{_lambda_.1} parent=1 // pred_region
      %s136 = ssub.s32 128, 128
      %137 = vsyncadd [#allocation4], %s136
      %s139 = sshll.u32 [#allocation7], 4
      %s140 = int_to_ptr.vmem [resolvable:$true] %s139
      %142 = dma.vmem_to_hbm [thread:$0]  %s140, 128, %s3, [#allocation4]
    $region25: #{_lambda_.1} parent=1 // pred_fallthru
      _
    // Predicated region
    $region26: #{_lambda_.1} parent=1 // pred_check
      _
    $region27: #{_lambda_.1} parent=1 // pred_check_branch
      %144 = sbr.rel (0) target = $region29
    $region28: #{_lambda_.1} parent=1 // pred_region
      %145 = dma.done [#allocation4], 128
    $region29: #{_lambda_.1} parent=1 // pred_fallthru
      _
    %146 = vsyncpa [#allocation3], 1
    %147 = vsyncpa [#allocation6], 1
    %148 = vsyncpa [#allocation4], 1

</llo_original>
